<compile_context>
chip_gen: v5e
topology: v5e:2x2
jax: 0.10.0
libtpu: 0.0.40
codegen_flags: <defaults>
</compile_context>

<pallas_src>
import jax
import jax.numpy as jnp
from jax.experimental import pallas as pl
from jax.experimental.pallas import tpu as pltpu


C = 8          # channels
GROUPS = 2     # conv2 groups

MAX_COLS_PER_BLOCK = 65536   # nb * tile_m cap: 2 MiB f32 x-tile, ~8 MiB double-buffered in+out
MAX_IMGS_PER_BLOCK = 8       # static in-kernel unroll bound for multi-image blocks


def _fused_kernel(x_ref, w_ref, b_ref, o_ref):
    """o[i] = relu(Wc^T @ x[i] + bc) for each image i in the block.

    x_ref/o_ref: (nb, C, tile_m)  channels on sublanes, pixels lane-dense
    w_ref:       (C, C) combined weight Wc^T (resident, tiny)
    b_ref:       (C, 1) combined bias column
    """
    w = w_ref[...]
    b = b_ref[...]
    for i in range(x_ref.shape[0]):               # static unroll, nb <= 8
        y = jnp.dot(w, x_ref[i], preferred_element_type=jnp.float32)
        o_ref[i] = jnp.maximum(y + b, 0.0).astype(o_ref.dtype)


def fused_forward(x_nchw, w1, b1, w2_grouped, b2):
    """x_nchw: (N, C, H, W) float32.

    w1: (C, C, 1, 1) dense 1x1 conv weight (out, in, 1, 1)
    w2_grouped: (C, C//GROUPS, 1, 1) grouped 1x1 conv weight
    b1, b2: (C,)
    """
    N, Cin, H, W = x_nchw.shape
    assert Cin == C
    HW = H * W

    # --- host-side weight prep (tiny 8x8 math, traced once) ----------------
    W1 = jnp.transpose(w1[:, :, 0, 0], (1, 0)).astype(jnp.float32)   # (Cin, Cout)

    # conv2 (grouped): expand to a dense block-diagonal (Cin, Cout) matrix.
    cpg = C // GROUPS
    W2 = jnp.zeros((C, C), dtype=jnp.float32)
    for g in range(GROUPS):
        blk = jnp.transpose(
            w2_grouped[g * cpg:(g + 1) * cpg, :, 0, 0], (1, 0))      # (cpg, cpg)
        W2 = W2.at[g * cpg:(g + 1) * cpg, g * cpg:(g + 1) * cpg].set(blk)

    B1 = b1.reshape(1, C).astype(jnp.float32)
    B2 = b2.reshape(1, C).astype(jnp.float32)

    # Algebraic fusion:
    #   v1 + v2 = x @ (W1@W2 + W2@W1) + (b1@W2 + b2@W1 + b1 + b2)
    Wc = W1 @ W2 + W2 @ W1                                           # (Cin, Cout)
    Bc = B1 @ W2 + B2 @ W1 + B1 + B2                                 # (1, Cout)
    Wct = Wc.T                                                       # (Cout, Cin)
    Bcol = Bc.T                                                      # (Cout, 1)

    # --- native NCHW view, no transposes ------------------------------------
    x_3d = x_nchw.reshape(N, C, HW)                                  # free reshape

    # --- block/tile selection ------------------------------------------------
    # * Huge images: split H*W into 65536-column slices (256 KiB per DMA row).
    # * Normal/small images: whole image per block; pack several small images
    #   per block, but keep >= 2 batch grid steps when N >= 2 so both v7x
    #   TensorCores get a "parallel" step (harmless on 1-TC v5e/v6e).
    if HW >= MAX_COLS_PER_BLOCK:
        nb, tile_m = 1, MAX_COLS_PER_BLOCK
    else:
        tile_m = HW                                  # full trailing dim: contiguous block
        nb = max(1, min(N, MAX_COLS_PER_BLOCK // HW, MAX_IMGS_PER_BLOCK))
        if N >= 2:
            nb = min(nb, -(-N // 2))                 # ceil(N/2): >= 2 batch steps
    grid = (pl.cdiv(N, nb), pl.cdiv(HW, tile_m))

    cost = pl.CostEstimate(
        flops=2 * N * HW * C * C,
        transcendentals=0,
        bytes_accessed=(2 * N * HW * C + C * C + C) * 4,
    )

    out_3d = pl.pallas_call(
        _fused_kernel,
        out_shape=jax.ShapeDtypeStruct((N, C, HW), jnp.float32),
        grid_spec=pltpu.PrefetchScalarGridSpec(
            num_scalar_prefetch=0,
            grid=grid,
            in_specs=[
                pl.BlockSpec((nb, C, tile_m), lambda n, i: (n, 0, i)),  # x block
                pl.BlockSpec((C, C), lambda n, i: (0, 0)),              # Wc^T (resident)
                pl.BlockSpec((C, 1), lambda n, i: (0, 0)),              # bias column
            ],
            out_specs=pl.BlockSpec((nb, C, tile_m), lambda n, i: (n, 0, i)),
        ),
        compiler_params=pltpu.CompilerParams(
            dimension_semantics=("parallel", "parallel")),
        cost_estimate=cost,
    )(x_3d, Wct, Bcol)

    return out_3d.reshape(N, C, H, W)                                # free reshape


def _reference(x_nchw, w1, b1, w2_grouped, b2):
    """Plain-JAX reference using lax convs for validation."""
    def conv_dense(x, w, b):
        y = jax.lax.conv_general_dilated(
            x, w, (1, 1), "VALID",
            dimension_numbers=("NCHW", "OIHW", "NCHW"))
        return y + b.reshape(1, -1, 1, 1)

    def conv_grouped(x, w, b):
        y = jax.lax.conv_general_dilated(
            x, w, (1, 1), "VALID",
            dimension_numbers=("NCHW", "OIHW", "NCHW"),
            feature_group_count=GROUPS)
        return y + b.reshape(1, -1, 1, 1)

    v1 = conv_grouped(conv_dense(x_nchw, w1, b1), w2_grouped, b2)
    v2 = conv_dense(conv_grouped(x_nchw, w2_grouped, b2), w1, b1)
    return jnp.maximum(v1 + v2, 0.0)


if __name__ == "__main__":
    key = jax.random.PRNGKey(0)
    kx, kx2, k1, k2, k3, k4 = jax.random.split(key, 6)

    w1 = jax.random.normal(k1, (C, C, 1, 1), dtype=jnp.float32) * 0.1
    b1 = jax.random.normal(k2, (C,), dtype=jnp.float32) * 0.1
    w2 = jax.random.normal(k3, (C, C // GROUPS, 1, 1), dtype=jnp.float32) * 0.1
    b2 = jax.random.normal(k4, (C,), dtype=jnp.float32) * 0.1

    # Test 1: batch=2, channels=8, spatial=16 (whole-image blocks, grid (2,1))
    x = jax.random.normal(kx, (2, C, 16, 16), dtype=jnp.float32)
    out = jax.block_until_ready(fused_forward(x, w1, b1, w2, b2))
    ref = jax.block_until_ready(_reference(x, w1, b1, w2, b2))
    assert out.shape == (2, C, 16, 16)
    # slightly looser tolerance: algebraic fusion reassociates fp32 sums
    assert jnp.allclose(out, ref, atol=1e-4, rtol=1e-4), "mismatch vs reference (test 1)"

    # Test 2: multi-image blocks (nb=4) with non-128-multiple H*W (full-extent block)
    x2 = jax.random.normal(kx2, (8, C, 12, 12), dtype=jnp.float32)
    out2 = jax.block_until_ready(fused_forward(x2, w1, b1, w2, b2))
    ref2 = jax.block_until_ready(_reference(x2, w1, b1, w2, b2))
    assert out2.shape == (8, C, 12, 12)
    assert jnp.allclose(out2, ref2, atol=1e-4, rtol=1e-4), "mismatch vs reference (test 2)"

    print("KERNEL_OK")
</pallas_src>

<mosaic_0001>
module attributes {stable_mosaic.version = 11 : i64} {
  func.func @_fused_kernel(%arg0: i32, %arg1: i32, %arg2: memref<1x8x256xf32, #tpu.memory_space<vmem>>, %arg3: memref<8x8xf32, #tpu.memory_space<vmem>>, %arg4: memref<8x1xf32, #tpu.memory_space<vmem>>, %arg5: memref<1x8x256xf32, #tpu.memory_space<vmem>>) attributes {dimension_semantics = [#tpu.dimension_semantics<parallel>, #tpu.dimension_semantics<parallel>], iteration_bounds = array<i64: 2, 1>, scalar_prefetch = 0 : i64, scratch_operands = 0 : i64, tpu.core_type = #tpu.core_type<tc>, window_params = [{transform_indices = @transform_0, window_bounds = array<i64: 1, 8, 256>}, {pipeline_mode = #tpu.pipeline_mode<synchronous>, transform_indices = @transform_1, window_bounds = array<i64: 8, 8>}, {pipeline_mode = #tpu.pipeline_mode<synchronous>, transform_indices = @transform_2, window_bounds = array<i64: 8, 1>}, {transform_indices = @transform_3, window_bounds = array<i64: 1, 8, 256>}]} {
    %c0 = arith.constant 0 : index
    %c0_0 = arith.constant 0 : index
    %0 = vector.load %arg3[%c0, %c0_0] : memref<8x8xf32, #tpu.memory_space<vmem>>, vector<8x8xf32>
    %c0_1 = arith.constant 0 : index
    %c0_2 = arith.constant 0 : index
    %1 = vector.load %arg4[%c0_1, %c0_2] : memref<8x1xf32, #tpu.memory_space<vmem>>, vector<8x1xf32>
    %c0_3 = arith.constant 0 : index
    %c0_4 = arith.constant 0 : index
    %c0_5 = arith.constant 0 : index
    %2 = vector.load %arg2[%c0_3, %c0_4, %c0_5] : memref<1x8x256xf32, #tpu.memory_space<vmem>>, vector<1x8x256xf32>
    %3 = vector.shape_cast %2 : vector<1x8x256xf32> to vector<8x256xf32>
    %cst = arith.constant dense<0.000000e+00> : vector<8x256xf32>
    %4 = tpu.matmul %0, %3, %cst {dimension_numbers = #tpu.dot_dimension_numbers<[1], [0], [0], [1], [0, 0, 1, 1], [], []>} : vector<8x8xf32>, vector<8x256xf32>, vector<8x256xf32> -> vector<8x256xf32>
    %5 = vector.broadcast %1 : vector<8x1xf32> to vector<8x256xf32>
    %6 = arith.addf %4, %5 : vector<8x256xf32>
    %cst_6 = arith.constant 0.000000e+00 : f32
    %7 = vector.broadcast %cst_6 : f32 to vector<8x256xf32>
    %8 = arith.maximumf %6, %7 : vector<8x256xf32>
    %c0_7 = arith.constant 0 : index
    %c0_8 = arith.constant 0 : index
    %c0_9 = arith.constant 0 : index
    %9 = vector.load %arg5[%c0_7, %c0_8, %c0_9] : memref<1x8x256xf32, #tpu.memory_space<vmem>>, vector<1x8x256xf32>
    %10 = vector.shape_cast %9 : vector<1x8x256xf32> to vector<8x256xf32>
    %11 = vector.shape_cast %8 : vector<8x256xf32> to vector<1x8x256xf32>
    tpu.vector_store %arg5[%c0_7, %c0_8, %c0_9], %11 {strides = array<i32>} : memref<1x8x256xf32, #tpu.memory_space<vmem>>, vector<1x8x256xf32>,
    return
  }
  func.func @transform_0(%arg0: i32, %arg1: i32) -> (i32, i32, i32) {
    %c0_i32 = arith.constant 0 : i32
    %c0_i32_0 = arith.constant 0 : i32
    return %arg0, %c0_i32, %arg1 : i32, i32, i32
  }
  func.func @transform_1(%arg0: i32, %arg1: i32) -> (i32, i32) {
    %c0_i32 = arith.constant 0 : i32
    %c0_i32_0 = arith.constant 0 : i32
    %c0_i32_1 = arith.constant 0 : i32
    return %c0_i32, %c0_i32_0 : i32, i32
  }
  func.func @transform_2(%arg0: i32, %arg1: i32) -> (i32, i32) {
    %c0_i32 = arith.constant 0 : i32
    %c0_i32_0 = arith.constant 0 : i32
    %c0_i32_1 = arith.constant 0 : i32
    return %c0_i32, %c0_i32_0 : i32, i32
  }
  func.func @transform_3(%arg0: i32, %arg1: i32) -> (i32, i32, i32) {
    %c0_i32 = arith.constant 0 : i32
    %c0_i32_0 = arith.constant 0 : i32
    return %arg0, %c0_i32, %arg1 : i32, i32, i32
  }
}

</mosaic_0001>

<llo_original>
// kernel: tpu_custom_call.1
$region0: #{tpu_custom_call.1}
  #allocation0 [shape = 'u32[]', space=smem, size = 0x4, offset = 0x4, fixed_abs, tag = 'smem constant byte address 0x4 - core index']
  #allocation1 [shape = 'u32[72,128]{1,0:T(1,128)}', space=vmem, size = 0x9000, scoped, tag = 'internal scratch']
  %s0 = inlined_call_operand.hbm [shape: f32[2,8,256], index: 0, kind: input, shape index: {}]
  %s1 = inlined_call_operand.vmem [shape: f32[8,8], index: 1, kind: input, shape index: {}]
  %s2 = inlined_call_operand.vmem [shape: f32[8,1], index: 2, kind: input, shape index: {}]
  %s3 = inlined_call_operand.hbm [shape: f32[2,8,256], index: 3, kind: output, shape index: {}]
  %s4 = sld [smem:[#allocation0]]
  $region49: #{tpu_custom_call.1} parent=0
    _
  %s6 = ssub.s32 1, %s4
  %s7 = scalar_select 0, %s6, %s4
  $region1: #{tpu_custom_call.1} parent=0
    #allocation2 [shape = 'u8[16384]{0}', space=vmem, size = 0x4000, scoped, tag = 'input window, operand 0']
    #allocation3 [shape = 's32[2]{0}', space=sflag, size = 0x8, scoped, tag = 'scoped memory for tpu_custom_call.1']
    #allocation4 [shape = 's32[2]{0}', space=sflag, size = 0x8, scoped, tag = 'scoped memory for tpu_custom_call.1']
    #allocation5 [shape = 'u8[16384]{0}', space=vmem, size = 0x4000, scoped, tag = 'output window, operand 0']
    %8 = vsyncpa [#allocation3], 0
    %s9 = scalar_lea.sflag [#allocation3], 1
    %10 = vsyncpa %s9, 0
    %11 = vsyncpa [#allocation4], 0
    %s12 = scalar_lea.sflag [#allocation4], 1
    %13 = vsyncpa %s12, 0
    loop: start=0, step=1, limit=4
    $region2: #{tpu_custom_call.1} parent=1 // loop_pre_header
      _
    $region3: #{tpu_custom_call.1} parent=1 // loop_header
      %s15 = sphi 0, %s19
      %p16 = scmp.ge.s32.totalorder %s15, 4
      %s22 = sphi 0, %s34
      %s23 = sphi 0, %s30
      %s24 = sphi 0, %s22
      %s25 = sphi 0, %s23
      %s26 = sphi 0, %s24
      %s27 = sphi 0, %s25
      %s39 = sphi 0, %s41
      %s42 = sphi 0, %s39
      %s43 = sphi 0, %s42
      %s59 = sphi 0, %s43
      %s63 = sphi 0, %s63
      %s65 = sphi 0, %s63
      %s66 = sphi 0, %s65
      %s80 = sphi 0, %s66
      %s84 = sphi 0, %s84
      %s86 = sphi 0, %s84
      %s87 = sphi 0, %s86
      %s101 = sphi 0, %s87
      %s109 = sphi 0, %s111
      %s112 = sphi 0, %s109
      %s113 = sphi 0, %s112
      %s129 = sphi 0, %s113
    $region4: #{tpu_custom_call.1} parent=1 // loop_header_branch
      %18 = sbr.rel (%p16) target = $region8
    $region5: #{tpu_custom_call.1} parent=1 // loop_body
      %s20 = ssub.s32 %s15, 1
      %s21 = ssub.s32 %s15, 2
      %s28 = sadd.s32 1, %s23
      %p29 = scmp.ge.s32.totalorder %s28, 1
      %s30 = scalar_select %p29, 0, %s28
      %s31 = sadd.s32 1, %s22
      %s32 = scalar_select %p29, %s31, %s22
      %p33 = scmp.ge.s32.totalorder %s32, 2
      %s34 = scalar_select %p33, 0, %s32
      %s35 = ssub.s32 %s22, %s34
      %s36 = ssub.s32 %s23, %s30
      %s37 = sor.u32 %s35, %s36
      %p38 = scmp.eq.s32.totalorder %s37, 0
      %s40 = sadd.s32 %s39, 1
      %s41 = scalar_select %p38, %s39, %s40
      %p44 = pneg %p38
      %p45 = scmp.eq.s32.totalorder %s15, 1
      %p46 = por %p44, %p45
      %p47 = scmp.ne.s32.totalorder %s39, %s42
      %p48 = scmp.eq.s32.totalorder %s15, 0
      %p49 = por %p47, %p48
      %p50 = scmp.ne.s32.totalorder %s39, %s42
      %p51 = scmp.eq.s32.totalorder %s20, 1
      %p52 = por %p50, %p51
      %p53 = scmp.ne.s32.totalorder %s42, %s43
      %p54 = scmp.eq.s32.totalorder %s20, 0
      %p55 = por %p53, %p54
      %p56 = scmp.ne.s32.totalorder %s42, %s43
      %p57 = scmp.eq.s32.totalorder %s21, 1
      %p58 = por %p56, %p57
      %p60 = scmp.ne.s32.totalorder %s43, %s59
      %p61 = scmp.eq.s32.totalorder %s21, 0
      %p62 = por %p60, %p61
      %s64 = sadd.s32 %s63, 1
      %p67 = scmp.eq.s32.totalorder %s15, 1
      %p68 = scmp.ne.s32.totalorder %s63, %s65
      %p69 = scmp.eq.s32.totalorder %s15, 0
      %p70 = por %p68, %p69
      %p71 = scmp.ne.s32.totalorder %s63, %s65
      %p72 = scmp.eq.s32.totalorder %s20, 1
      %p73 = por %p71, %p72
      %p74 = scmp.ne.s32.totalorder %s65, %s66
      %p75 = scmp.eq.s32.totalorder %s20, 0
      %p76 = por %p74, %p75
      %p77 = scmp.ne.s32.totalorder %s65, %s66
      %p78 = scmp.eq.s32.totalorder %s21, 1
      %p79 = por %p77, %p78
      %p81 = scmp.ne.s32.totalorder %s66, %s80
      %p82 = scmp.eq.s32.totalorder %s21, 0
      %p83 = por %p81, %p82
      %s85 = sadd.s32 %s84, 1
      %p88 = scmp.eq.s32.totalorder %s15, 1
      %p89 = scmp.ne.s32.totalorder %s84, %s86
      %p90 = scmp.eq.s32.totalorder %s15, 0
      %p91 = por %p89, %p90
      %p92 = scmp.ne.s32.totalorder %s84, %s86
      %p93 = scmp.eq.s32.totalorder %s20, 1
      %p94 = por %p92, %p93
      %p95 = scmp.ne.s32.totalorder %s86, %s87
      %p96 = scmp.eq.s32.totalorder %s20, 0
      %p97 = por %p95, %p96
      %p98 = scmp.ne.s32.totalorder %s86, %s87
      %p99 = scmp.eq.s32.totalorder %s21, 1
      %p100 = por %p98, %p99
      %p102 = scmp.ne.s32.totalorder %s87, %s101
      %p103 = scmp.eq.s32.totalorder %s21, 0
      %p104 = por %p102, %p103
      %s105 = ssub.s32 %s22, %s34
      %s106 = ssub.s32 %s23, %s30
      %s107 = sor.u32 %s105, %s106
      %p108 = scmp.eq.s32.totalorder %s107, 0
      %s110 = sadd.s32 %s109, 1
      %s111 = scalar_select %p108, %s109, %s110
      %p114 = pneg %p108
      %p115 = scmp.eq.s32.totalorder %s15, 1
      %p116 = por %p114, %p115
      %p117 = scmp.ne.s32.totalorder %s109, %s112
      %p118 = scmp.eq.s32.totalorder %s15, 0
      %p119 = por %p117, %p118
      %p120 = scmp.ne.s32.totalorder %s109, %s112
      %p121 = scmp.eq.s32.totalorder %s20, 1
      %p122 = por %p120, %p121
      %p123 = scmp.ne.s32.totalorder %s112, %s113
      %p124 = scmp.eq.s32.totalorder %s20, 0
      %p125 = por %p123, %p124
      %p126 = scmp.ne.s32.totalorder %s112, %s113
      %p127 = scmp.eq.s32.totalorder %s21, 1
      %p128 = por %p126, %p127
      %p130 = scmp.ne.s32.totalorder %s113, %s129
      %p131 = scmp.eq.s32.totalorder %s21, 0
      %p132 = por %p130, %p131
      %p133 = scmp.le.s32.totalorder 1, %s15
      %p134 = scmp.lt.s32.totalorder %s15, 3
      %p135 = pnand %p133, %p134
      %p136 = pneg %p135
      // Predicated region
      $region9: #{tpu_custom_call.1} parent=5 // pred_check
        _
      $region10: #{tpu_custom_call.1} parent=5 // pred_check_branch
        %138 = sbr.rel (%p135) target = $region12
      $region11: #{tpu_custom_call.1} parent=5 // pred_region
        %s139 = ssub.s32 %s15, 1
        // Predicated region
        $region13: #{tpu_custom_call.1} parent=11 // pred_check
          %p140 = pneg %p76
        $region14: #{tpu_custom_call.1} parent=11 // pred_check_branch
          %142 = sbr.rel (%p140) target = $region16
        $region15: #{tpu_custom_call.1} parent=11 // pred_region
          _
        $region16: #{tpu_custom_call.1} parent=11 // pred_fallthru
          _
        // Predicated region
        $region17: #{tpu_custom_call.1} parent=11 // pred_check
          %p143 = pneg %p97
        $region18: #{tpu_custom_call.1} parent=11 // pred_check_branch
          %145 = sbr.rel (%p143) target = $region20
        $region19: #{tpu_custom_call.1} parent=11 // pred_region
          _
        $region20: #{tpu_custom_call.1} parent=11 // pred_fallthru
          _
      $region12: #{tpu_custom_call.1} parent=5 // pred_fallthru
        _
      %p146 = scmp.lt.s32.totalorder %s15, 2
      // Predicated region
      $region21: #{tpu_custom_call.1} parent=5 // pred_check
        %p147 = pneg %p146
      $region22: #{tpu_custom_call.1} parent=5 // pred_check_branch
        %149 = sbr.rel (%p147) target = $region24
      $region23: #{tpu_custom_call.1} parent=5 // pred_region
        // Predicated region
        $region25: #{tpu_custom_call.1} parent=23 // pred_check
          %p150 = pneg %p49
        $region26: #{tpu_custom_call.1} parent=23 // pred_check_branch
          %152 = sbr.rel (%p150) target = $region28
        $region27: #{tpu_custom_call.1} parent=23 // pred_region
          %s153 = sand.u32 %s39, 1
          %s154 = scalar_lea.sflag [#allocation3], %s153
          %s155 = sand.u32 %s39, 1
          %s156 = smul.addr %s155, 16
          %s157 = scalar_lea.vmem [#allocation2], %s156
          %s158 = smul.u32 2, %s23
          %160 = vsyncadd %s154, 0
          %s161 = smul.addr %s22, 2
          %s162 = sadd.s32 %s158, %s161
          %s163 = smul.addr %s162, 8
          %s164 = scalar_lea.hbm %s0, %s163
          %s166 = sshll.u32 %s164, 4
          %s167 = int_to_ptr.hbm [resolvable:$true] %s166
          %s168 = sshll.u32 %s157, 4
          %s169 = int_to_ptr.vmem [resolvable:$true] %s168
          %171 = dma.hbm_to_vmem [thread:$0]  %s167, 256, %s169, %s154
        $region28: #{tpu_custom_call.1} parent=23 // pred_fallthru
          _
      $region24: #{tpu_custom_call.1} parent=5 // pred_fallthru
        _
      %p172 = scmp.le.s32.totalorder 1, %s15
      %p173 = scmp.lt.s32.totalorder %s15, 3
      %p174 = pnand %p172, %p173
      %p175 = pneg %p174
      // Predicated region
      $region29: #{tpu_custom_call.1} parent=5 // pred_check
        _
      $region30: #{tpu_custom_call.1} parent=5 // pred_check_branch
        %177 = sbr.rel (%p174) target = $region32
      $region31: #{tpu_custom_call.1} parent=5 // pred_region
        %s178 = ssub.s32 %s15, 1
        %s179 = sand.u32 %s42, 1
        %s180 = scalar_lea.sflag [#allocation3], %s179
        %s181 = sand.u32 %s42, 1
        %s182 = smul.addr %s181, 16
        %s183 = scalar_lea.vmem [#allocation2], %s182
        // Predicated region
        $region33: #{tpu_custom_call.1} parent=31 // pred_check
          %p184 = pneg %p55
        $region34: #{tpu_custom_call.1} parent=31 // pred_check_branch
          %186 = sbr.rel (%p184) target = $region36
        $region35: #{tpu_custom_call.1} parent=31 // pred_region
          %188 = dma.done %s180, 256
        $region36: #{tpu_custom_call.1} parent=31 // pred_fallthru
          _
        %s189 = sand.u32 %s42, 1
        %s190 = scalar_lea.sflag [#allocation3], %s189
        %s191 = sand.u32 %s42, 1
        %s192 = smul.addr %s191, 16
        %s193 = scalar_lea.vmem [#allocation2], %s192
        %p194 = pneg %p55
        %p195 = pneg %p52
        %p196 = pneg %p76
        %p197 = pneg %p73
        %p198 = pneg %p97
        %p199 = pneg %p94
        %p200 = pneg %p125
        %p201 = pneg %p122
        %s202 = sand.u32 %s112, 1
        %s203 = scalar_lea.sflag [#allocation4], %s202
        %s204 = sand.u32 %s112, 1
        %s205 = smul.addr %s204, 16
        %s206 = scalar_lea.vmem [#allocation5], %s205
        %s207 = smul.u32 2, %s25
        %s208 = smul.u32 2, %s25
        %v209 = vld [vmem:[%s1] sm:$0xff]
        %v210 = vld [vmem:[%s2] sm:$0xff]
        %v211 = vld [vmem:[%s183] sm:$0xff]
        %v212 = vld [vmem:[%s183 + $0x8] sm:$0xff]
        %214 = vset.pattern.permute.xlu0 0
        %215 = vperm.xlu0 %214, %v210
        %v216 = vpop.permute.xlu0 %215
        %vm218 = vcmask 64512
        %v220 = vsel %vm218, %v209, 0
        %222 = vmatpush.msra.mxu0 0.0
        %223 = vmatpush.msra.mxu0 0.0
        %224 = vmatpush.msra.mxu0 0.0
        %225 = vmatpush.msra.mxu0 0.0
        %226 = vmatpush.msra.mxu0 0.0
        %227 = vmatpush.msra.mxu0 0.0
        %228 = vmatpush.msra.mxu0 0.0
        %229 = vmatpush.msra.mxu0 0.0
        %230 = vmatpush.msra.mxu0 0.0
        %231 = vmatpush.msra.mxu0 0.0
        %232 = vmatpush.msra.mxu0 0.0
        %233 = vmatpush.msra.mxu0 0.0
        %234 = vmatpush.msra.mxu0 0.0
        %235 = vmatpush.msra.mxu0 0.0
        %236 = vmatpush.msra.mxu0 0.0
        %237 = vmatpush.msra.mxu0 %v211
        %238 = vmatmul.f32.gmra.mxu0 %v220
        %v239 = vpop.f32.mrf.mxu0
        %v240 = vadd.f32 %v216, %v239
        %241 = vdwg.mxu0
        %242 = vmatpush.msra.mxu0 0.0
        %243 = vmatpush.msra.mxu0 0.0
        %244 = vmatpush.msra.mxu0 0.0
        %245 = vmatpush.msra.mxu0 0.0
        %246 = vmatpush.msra.mxu0 0.0
        %247 = vmatpush.msra.mxu0 0.0
        %248 = vmatpush.msra.mxu0 0.0
        %249 = vmatpush.msra.mxu0 0.0
        %250 = vmatpush.msra.mxu0 0.0
        %251 = vmatpush.msra.mxu0 0.0
        %252 = vmatpush.msra.mxu0 0.0
        %253 = vmatpush.msra.mxu0 0.0
        %254 = vmatpush.msra.mxu0 0.0
        %255 = vmatpush.msra.mxu0 0.0
        %256 = vmatpush.msra.mxu0 0.0
        %257 = vmatpush.msra.mxu0 %v212
        %258 = vmatmul.f32.gmra.mxu0 %v220
        %v259 = vpop.f32.mrf.mxu0
        %v260 = vadd.f32 %v216, %v259
        %261 = vdwg.mxu0
        %v262 = vmax.f32 %v240, 0.0
        %v263 = vmax.f32 %v260, 0.0
        %264 = vst [vmem:[%s206] sm:$0xff] %v262
        %265 = vst [vmem:[%s206 + $0x8] sm:$0xff] %v263
        %s266 = sand.u32 %s112, 1
        %s267 = scalar_lea.sflag [#allocation4], %s266
        %s268 = sand.u32 %s112, 1
        %s269 = smul.addr %s268, 16
        %s270 = scalar_lea.vmem [#allocation5], %s269
        // Predicated region
        $region37: #{tpu_custom_call.1} parent=31 // pred_check
          %p271 = pneg %p122
        $region38: #{tpu_custom_call.1} parent=31 // pred_check_branch
          %273 = sbr.rel (%p271) target = $region40
        $region39: #{tpu_custom_call.1} parent=31 // pred_region
          %s274 = smul.u32 2, %s25
          %276 = vsyncadd %s267, 0
          %s277 = smul.addr %s24, 2
          %s278 = sadd.s32 %s274, %s277
          %s279 = smul.addr %s278, 8
          %s280 = scalar_lea.hbm %s3, %s279
          %s282 = sshll.u32 %s270, 4
          %s283 = int_to_ptr.vmem [resolvable:$true] %s282
          %s284 = sshll.u32 %s280, 4
          %s285 = int_to_ptr.hbm [resolvable:$true] %s284
          %287 = dma.vmem_to_hbm [thread:$0]  %s283, 256, %s285, %s267
        $region40: #{tpu_custom_call.1} parent=31 // pred_fallthru
          _
      $region32: #{tpu_custom_call.1} parent=5 // pred_fallthru
        _
      %p288 = scmp.le.s32.totalorder 2, %s15
      // Predicated region
      $region41: #{tpu_custom_call.1} parent=5 // pred_check
        %p289 = pneg %p288
      $region42: #{tpu_custom_call.1} parent=5 // pred_check_branch
        %291 = sbr.rel (%p289) target = $region44
      $region43: #{tpu_custom_call.1} parent=5 // pred_region
        %s292 = ssub.s32 %s15, 2
        // Predicated region
        $region45: #{tpu_custom_call.1} parent=43 // pred_check
          %p293 = pneg %p128
        $region46: #{tpu_custom_call.1} parent=43 // pred_check_branch
          %295 = sbr.rel (%p293) target = $region48
        $region47: #{tpu_custom_call.1} parent=43 // pred_region
          %s296 = sand.u32 %s113, 1
          %s297 = scalar_lea.sflag [#allocation4], %s296
          %s298 = sand.u32 %s113, 1
          %s299 = smul.addr %s298, 16
          %s300 = scalar_lea.vmem [#allocation5], %s299
          %302 = dma.done %s297, 256
        $region48: #{tpu_custom_call.1} parent=43 // pred_fallthru
          _
      $region44: #{tpu_custom_call.1} parent=5 // pred_fallthru
        _
    $region6: #{tpu_custom_call.1} parent=1 // loop_footer
      %s19 = sadd.s32 1, %s15
    $region7: #{tpu_custom_call.1} parent=1 // loop_footer_branch
      %14 = sbr.rel target = $region3
    $region8: #{tpu_custom_call.1} parent=1 // loop_exit
      _
    %303 = vsyncpa [#allocation3], 1
    %s304 = scalar_lea.sflag [#allocation3], 1
    %305 = vsyncpa %s304, 1
    %306 = vsyncpa [#allocation4], 1
    %s307 = scalar_lea.sflag [#allocation4], 1
    %308 = vsyncpa %s307, 1

</llo_original>
